<compile_context>
chip_gen: v6e
topology: v6e:2x2x1
jax: 0.10.0
libtpu: 0.0.40
codegen_flags: <defaults>
</compile_context>

<pallas_src>
import jax
import jax.numpy as jnp
from jax.experimental import pallas as pl
from jax.experimental.pallas import tpu as pltpu

H1 = 24
H2 = 36
F_PAD = 128          # lane-padded hidden width shared by every layer
NEG_MASK = -1e30     # baked into bias row 2 for padded action lanes


def _round_up(x, m):
    return ((x + m - 1) // m) * m


def policy_kernel(x_ref, w_ref, b_ref, o_ref):
    s = x_ref.shape[-1]                 # real state_size
    a = o_ref.shape[-1]                 # real action_size

    x = x_ref[...]                      # [TB, S] (narrow, un-padded input)
    b = b_ref[...]                      # [3, F_PAD]

    # fc1 + relu: contract against the static [S, 128] sub-slice of W1.
    # Padded output cols of W1/b1 are zero -> padded h1 lanes stay 0.
    h1 = jnp.dot(x, w_ref[0, :s, :], preferred_element_type=jnp.float32)
    h1 = jnp.maximum(h1 + b[0:1, :], 0.0)
    # fc2 + relu
    h2 = jnp.dot(h1, w_ref[1], preferred_element_type=jnp.float32)
    h2 = jnp.maximum(h2 + b[1:2, :], 0.0)
    # fc3 (+ bias that already carries -1e30 on padded action lanes)
    logits = jnp.dot(h2, w_ref[2], preferred_element_type=jnp.float32)
    logits = logits + b[2:3, :]

    # Softmax over the 128-wide slab: padded lanes hold -1e30 so they
    # contribute exactly 0 to the denominator.
    m = jnp.max(logits, axis=-1, keepdims=True)
    e = jnp.exp(logits - m)
    inv = pl.reciprocal(jnp.sum(e, axis=-1, keepdims=True), approx=False)
    probs = e * inv

    # Narrow store of the real action lanes only.
    o_ref[...] = probs[:, :a]


def pack_params(params):
    """Pack (w1,b1,w2,b2,w3,b3) into one [3,128,128] weight buffer and one
    [3,128] bias buffer.  Weight padding is zero (keeps padded lanes inert);
    bias row 2 is -1e30 on the padded action lanes (softmax mask for free)."""
    w1, b1, w2, b2, w3, b3 = params
    s = w1.shape[0]
    a = w3.shape[1]
    w_packed = jnp.zeros((3, F_PAD, F_PAD), jnp.float32)
    w_packed = w_packed.at[0, :s, :H1].set(w1)
    w_packed = w_packed.at[1, :H1, :H2].set(w2)
    w_packed = w_packed.at[2, :H2, :a].set(w3)
    b_packed = jnp.zeros((3, F_PAD), jnp.float32)
    b_packed = b_packed.at[0, :H1].set(b1.reshape(-1))
    b_packed = b_packed.at[1, :H2].set(b2.reshape(-1))
    b_packed = b_packed.at[2, :].set(NEG_MASK)        # mask padded action lanes
    b_packed = b_packed.at[2, :a].set(b3.reshape(-1))
    return w_packed, b_packed


def policy_forward(x, w_packed, b_packed, action_size, *, block_b=None):
    """x: [B, state_size] f32 -> [B, action_size] f32 softmax probabilities."""
    B, state_size = x.shape
    x = x.astype(jnp.float32)

    if block_b is None:
        # >=2 grid steps when B > 8 (keeps both v7x TensorCores busy via the
        # "parallel" batch axis), capped at 1024 rows to amortize per-step
        # overhead while staying far under VMEM on v5e/v6e/v7x.
        block_b = max(8, min(1024, pl.cdiv(B, 2)))
    block_b = _round_up(min(block_b, _round_up(B, 8)), 8)
    grid = (pl.cdiv(B, block_b),)

    # Effective MXU work (lane-padded): three 128-wide matmuls per row.
    flops = 2 * B * F_PAD * (state_size + 2 * F_PAD)
    bytes_accessed = (x.size + B * action_size
                      + w_packed.size + b_packed.size) * 4

    return pl.pallas_call(
        policy_kernel,
        out_shape=jax.ShapeDtypeStruct((B, action_size), jnp.float32),
        grid=grid,
        in_specs=[
            # Narrow activation stream: last dim == full array dim is legal.
            pl.BlockSpec((block_b, state_size), lambda i: (i, 0)),
            # Packed params: constant index_map -> VMEM-resident across grid.
            pl.BlockSpec((3, F_PAD, F_PAD), lambda i: (0, 0, 0)),
            pl.BlockSpec((3, F_PAD), lambda i: (0, 0)),
        ],
        # Narrow output: store only the real action lanes per tile.
        out_specs=pl.BlockSpec((block_b, action_size), lambda i: (i, 0)),
        compiler_params=pltpu.CompilerParams(
            dimension_semantics=("parallel",),   # batch axis shards across TCs
            vmem_limit_bytes=32 * 1024 * 1024,
        ),
        cost_estimate=pl.CostEstimate(
            flops=flops, transcendentals=B * F_PAD, bytes_accessed=bytes_accessed
        ),
    )(x, w_packed, b_packed)


def init_params(key, state_size, action_size):
    """Deterministic init mimicking PyTorch's default Linear init
    (uniform(-1/sqrt(fan_in), 1/sqrt(fan_in))). Weights stored as [in, out]."""
    dims = [(state_size, H1), (H1, H2), (H2, action_size)]
    params = []
    for (fan_in, fan_out) in dims:
        key, kw, kb = jax.random.split(key, 3)
        bound = 1.0 / jnp.sqrt(jnp.float32(fan_in))
        w = jax.random.uniform(kw, (fan_in, fan_out), jnp.float32, -bound, bound)
        b = jax.random.uniform(kb, (1, fan_out), jnp.float32, -bound, bound)
        params += [w, b]
    return tuple(params)


if __name__ == "__main__":
    batch = 100          # small demo batch
    state_size = 4       # e.g. CartPole observation
    action_size = 2

    key = jax.random.PRNGKey(0)
    key, kx = jax.random.split(key)
    x = jax.random.normal(kx, (batch, state_size), jnp.float32)

    params = init_params(key, state_size, action_size)
    w_packed, b_packed = pack_params(params)

    # Default block_b -> 56 rows, grid of 2 steps (exercises the partial last
    # block and, on v7x, both TensorCores).
    probs = policy_forward(x, w_packed, b_packed, action_size)
    probs = jax.block_until_ready(probs)

    # sanity: reference in plain JAX (matches the PyTorch module's forward)
    w1, b1, w2, b2, w3, b3 = params
    h = jax.nn.relu(x @ w1 + b1)
    h = jax.nn.relu(h @ w2 + b2)
    ref = jax.nn.softmax(h @ w3 + b3, axis=1)
    assert probs.shape == (batch, action_size)
    assert jnp.allclose(probs, ref, atol=1e-5), "mismatch vs reference"
    assert jnp.allclose(jnp.sum(probs, axis=1), 1.0, atol=1e-5)

    # TODO(synk): Policy.act() (Categorical sampling / log_prob) is host-side
    # control flow in the PyTorch module; could be fused in-kernel with
    # pltpu.prng_seed + pltpu.prng_random_bits if sampling throughput matters.
    print("KERNEL_OK")
</pallas_src>

<mosaic_0001>
module attributes {stable_mosaic.version = 11 : i64} {
  func.func @policy_kernel(%arg0: i32, %arg1: memref<56x4xf32, #tpu.memory_space<vmem>>, %arg2: memref<3x128x128xf32, #tpu.memory_space<vmem>>, %arg3: memref<3x128xf32, #tpu.memory_space<vmem>>, %arg4: memref<56x2xf32, #tpu.memory_space<vmem>>) attributes {dimension_semantics = [#tpu.dimension_semantics<parallel>], iteration_bounds = array<i64: 2>, scalar_prefetch = 0 : i64, scratch_operands = 0 : i64, tpu.core_type = #tpu.core_type<tc>, window_params = [{transform_indices = @transform_0, window_bounds = array<i64: 56, 4>}, {pipeline_mode = #tpu.pipeline_mode<synchronous>, transform_indices = @transform_1, window_bounds = array<i64: 3, 128, 128>}, {pipeline_mode = #tpu.pipeline_mode<synchronous>, transform_indices = @transform_2, window_bounds = array<i64: 3, 128>}, {transform_indices = @transform_3, window_bounds = array<i64: 56, 2>}]} {
    %c0 = arith.constant 0 : index
    %c0_0 = arith.constant 0 : index
    %0 = vector.load %arg1[%c0, %c0_0] : memref<56x4xf32, #tpu.memory_space<vmem>>, vector<56x4xf32>
    %c0_1 = arith.constant 0 : index
    %c0_2 = arith.constant 0 : index
    %1 = vector.load %arg3[%c0_1, %c0_2] : memref<3x128xf32, #tpu.memory_space<vmem>>, vector<3x128xf32>
    %c0_3 = arith.constant 0 : index
    %c0_4 = arith.constant 0 : index
    %c0_5 = arith.constant 0 : index
    %2 = vector.load %arg2[%c0_3, %c0_4, %c0_5] : memref<3x128x128xf32, #tpu.memory_space<vmem>>, vector<1x4x128xf32>
    %3 = vector.shape_cast %2 : vector<1x4x128xf32> to vector<4x128xf32>
    %cst = arith.constant dense<0.000000e+00> : vector<56x128xf32>
    %4 = tpu.matmul %0, %3, %cst {dimension_numbers = #tpu.dot_dimension_numbers<[1], [0], [0], [1], [0, 0, 1, 1], [], []>} : vector<56x4xf32>, vector<4x128xf32>, vector<56x128xf32> -> vector<56x128xf32>
    %5 = vector.extract_strided_slice %1 {offsets = [0, 0], sizes = [1, 128], strides = [1, 1]} : vector<3x128xf32> to vector<1x128xf32>
    %6 = vector.broadcast %5 : vector<1x128xf32> to vector<56x128xf32>
    %7 = arith.addf %4, %6 : vector<56x128xf32>
    %cst_6 = arith.constant 0.000000e+00 : f32
    %8 = vector.broadcast %cst_6 : f32 to vector<56x128xf32>
    %9 = arith.maximumf %7, %8 : vector<56x128xf32>
    %c1 = arith.constant 1 : index
    %c0_7 = arith.constant 0 : index
    %c0_8 = arith.constant 0 : index
    %10 = vector.load %arg2[%c1, %c0_7, %c0_8] : memref<3x128x128xf32, #tpu.memory_space<vmem>>, vector<1x128x128xf32>
    %11 = vector.shape_cast %10 : vector<1x128x128xf32> to vector<128x128xf32>
    %cst_9 = arith.constant dense<0.000000e+00> : vector<56x128xf32>
    %12 = tpu.matmul %9, %11, %cst_9 {dimension_numbers = #tpu.dot_dimension_numbers<[1], [0], [0], [1], [0, 0, 1, 1], [], []>} : vector<56x128xf32>, vector<128x128xf32>, vector<56x128xf32> -> vector<56x128xf32>
    %13 = vector.extract_strided_slice %1 {offsets = [1, 0], sizes = [1, 128], strides = [1, 1]} : vector<3x128xf32> to vector<1x128xf32>
    %14 = vector.broadcast %13 : vector<1x128xf32> to vector<56x128xf32>
    %15 = arith.addf %12, %14 : vector<56x128xf32>
    %cst_10 = arith.constant 0.000000e+00 : f32
    %16 = vector.broadcast %cst_10 : f32 to vector<56x128xf32>
    %17 = arith.maximumf %15, %16 : vector<56x128xf32>
    %c2 = arith.constant 2 : index
    %c0_11 = arith.constant 0 : index
    %c0_12 = arith.constant 0 : index
    %18 = vector.load %arg2[%c2, %c0_11, %c0_12] : memref<3x128x128xf32, #tpu.memory_space<vmem>>, vector<1x128x128xf32>
    %19 = vector.shape_cast %18 : vector<1x128x128xf32> to vector<128x128xf32>
    %cst_13 = arith.constant dense<0.000000e+00> : vector<56x128xf32>
    %20 = tpu.matmul %17, %19, %cst_13 {dimension_numbers = #tpu.dot_dimension_numbers<[1], [0], [0], [1], [0, 0, 1, 1], [], []>} : vector<56x128xf32>, vector<128x128xf32>, vector<56x128xf32> -> vector<56x128xf32>
    %21 = vector.extract_strided_slice %1 {offsets = [2, 0], sizes = [1, 128], strides = [1, 1]} : vector<3x128xf32> to vector<1x128xf32>
    %22 = vector.broadcast %21 : vector<1x128xf32> to vector<56x128xf32>
    %23 = arith.addf %20, %22 : vector<56x128xf32>
    %cst_14 = arith.constant dense<0xFF800000> : vector<56xf32>
    %24 = vector.multi_reduction <maximumf>, %23, %cst_14 [1] : vector<56x128xf32> to vector<56xf32>
    %25 = vector.shape_cast %24 : vector<56xf32> to vector<56x1xf32>
    %26 = vector.broadcast %25 : vector<56x1xf32> to vector<56x128xf32>
    %27 = arith.subf %23, %26 : vector<56x128xf32>
    %28 = math.exp %27 : vector<56x128xf32>
    %cst_15 = arith.constant dense<0.000000e+00> : vector<56xf32>
    %29 = vector.multi_reduction <add>, %28, %cst_15 [1] : vector<56x128xf32> to vector<56xf32>
    %30 = vector.shape_cast %29 : vector<56xf32> to vector<56x1xf32>
    %31 = tpu.reciprocal %30 : vector<56x1xf32> -> vector<56x1xf32>
    %32 = vector.broadcast %31 : vector<56x1xf32> to vector<56x128xf32>
    %33 = arith.mulf %28, %32 : vector<56x128xf32>
    %34 = vector.extract_strided_slice %33 {offsets = [0, 0], sizes = [56, 2], strides = [1, 1]} : vector<56x128xf32> to vector<56x2xf32>
    %c0_16 = arith.constant 0 : index
    %c0_17 = arith.constant 0 : index
    %35 = vector.load %arg4[%c0_16, %c0_17] : memref<56x2xf32, #tpu.memory_space<vmem>>, vector<56x2xf32>
    tpu.vector_store %arg4[%c0_16, %c0_17], %34 {strides = array<i32>} : memref<56x2xf32, #tpu.memory_space<vmem>>, vector<56x2xf32>,
    return
  }
  func.func @transform_0(%arg0: i32) -> (i32, i32) {
    %c0_i32 = arith.constant 0 : i32
    %c0_i32_0 = arith.constant 0 : i32
    return %arg0, %c0_i32 : i32, i32
  }
  func.func @transform_1(%arg0: i32) -> (i32, i32, i32) {
    %c0_i32 = arith.constant 0 : i32
    %c0_i32_0 = arith.constant 0 : i32
    %c0_i32_1 = arith.constant 0 : i32
    %c0_i32_2 = arith.constant 0 : i32
    return %c0_i32, %c0_i32_0, %c0_i32_1 : i32, i32, i32
  }
  func.func @transform_2(%arg0: i32) -> (i32, i32) {
    %c0_i32 = arith.constant 0 : i32
    %c0_i32_0 = arith.constant 0 : i32
    %c0_i32_1 = arith.constant 0 : i32
    return %c0_i32, %c0_i32_0 : i32, i32
  }
  func.func @transform_3(%arg0: i32) -> (i32, i32) {
    %c0_i32 = arith.constant 0 : i32
    %c0_i32_0 = arith.constant 0 : i32
    return %arg0, %c0_i32 : i32, i32
  }
}

</mosaic_0001>

<llo_original>
// kernel: tpu_custom_call.1
$region0: #{tpu_custom_call.1}
  #allocation0 [shape = 'u32[]', space=smem, size = 0x4, offset = 0x4, fixed_abs, tag = 'smem constant byte address 0x4 - core index']
  #allocation1 [shape = 'u32[144,128]{1,0:T(1,128)}', space=vmem, size = 0x12000, scoped, tag = 'internal scratch']
  %s0 = inlined_call_operand.vmem [shape: f32[100,4], index: 0, kind: input, shape index: {}]
  %s1 = inlined_call_operand.hbm [shape: f32[3,128,128], index: 1, kind: input, shape index: {}]
  %s2 = inlined_call_operand.vmem [shape: f32[3,128], index: 2, kind: input, shape index: {}]
  %s3 = inlined_call_operand.vmem [shape: f32[100,2], index: 3, kind: output, shape index: {}]
  %s4 = sld [smem:[#allocation0]]
  $region97: #{tpu_custom_call.1} parent=0
    _
  %s6 = ssub.s32 1, %s4
  %s7 = scalar_select 0, %s6, %s4
  $region1: #{tpu_custom_call.1} parent=0
    #allocation2 [shape = 'u8[196608]{0}', space=vmem, size = 0x30000, scoped, tag = 'input window, operand 1, single buffered']
    #allocation3 [shape = 's32[2]{0}', space=sflag, size = 0x8, scoped, tag = 'scoped memory for tpu_custom_call.1']
    #allocation4 [shape = 'u8[57344]{0}', space=vmem, size = 0xe000, scoped, tag = 'output window, operand 0']
    %8 = vsyncpa [#allocation3], 0
    loop: start=0, step=1, limit=4
    $region2: #{tpu_custom_call.1} parent=1 // loop_pre_header
      _
    $region3: #{tpu_custom_call.1} parent=1 // loop_header
      %s10 = sphi 0, %s14
      %p11 = scmp.ge.s32.totalorder %s10, 4
      %s20 = sphi 0, %s22
      %s23 = sphi 0, %s20
      %s24 = sphi 0, %s23
      %s40 = sphi 0, %s24
      %s44 = sphi 0, %s44
      %s46 = sphi 0, %s44
      %s47 = sphi 0, %s46
      %s61 = sphi 0, %s47
      %s65 = sphi 0, %s65
      %s67 = sphi 0, %s65
      %s68 = sphi 0, %s67
      %s82 = sphi 0, %s68
      %s88 = sphi 0, %s90
      %s91 = sphi 0, %s88
      %s92 = sphi 0, %s91
      %s108 = sphi 0, %s92
    $region4: #{tpu_custom_call.1} parent=1 // loop_header_branch
      %13 = sbr.rel (%p11) target = $region8
    $region5: #{tpu_custom_call.1} parent=1 // loop_body
      %s15 = ssub.s32 %s10, 1
      %s16 = ssub.s32 %s10, 2
      %s17 = sadd.s32 %s10, 1
      %s18 = ssub.s32 %s10, %s17
      %p19 = scmp.eq.s32.totalorder %s18, 0
      %s21 = sadd.s32 %s20, 1
      %s22 = scalar_select %p19, %s20, %s21
      %p25 = pneg %p19
      %p26 = scmp.eq.s32.totalorder %s10, 1
      %p27 = por %p25, %p26
      %p28 = scmp.ne.s32.totalorder %s20, %s23
      %p29 = scmp.eq.s32.totalorder %s10, 0
      %p30 = por %p28, %p29
      %p31 = scmp.ne.s32.totalorder %s20, %s23
      %p32 = scmp.eq.s32.totalorder %s15, 1
      %p33 = por %p31, %p32
      %p34 = scmp.ne.s32.totalorder %s23, %s24
      %p35 = scmp.eq.s32.totalorder %s15, 0
      %p36 = por %p34, %p35
      %p37 = scmp.ne.s32.totalorder %s23, %s24
      %p38 = scmp.eq.s32.totalorder %s16, 1
      %p39 = por %p37, %p38
      %p41 = scmp.ne.s32.totalorder %s24, %s40
      %p42 = scmp.eq.s32.totalorder %s16, 0
      %p43 = por %p41, %p42
      %s45 = sadd.s32 %s44, 1
      %p48 = scmp.eq.s32.totalorder %s10, 1
      %p49 = scmp.ne.s32.totalorder %s44, %s46
      %p50 = scmp.eq.s32.totalorder %s10, 0
      %p51 = por %p49, %p50
      %p52 = scmp.ne.s32.totalorder %s44, %s46
      %p53 = scmp.eq.s32.totalorder %s15, 1
      %p54 = por %p52, %p53
      %p55 = scmp.ne.s32.totalorder %s46, %s47
      %p56 = scmp.eq.s32.totalorder %s15, 0
      %p57 = por %p55, %p56
      %p58 = scmp.ne.s32.totalorder %s46, %s47
      %p59 = scmp.eq.s32.totalorder %s16, 1
      %p60 = por %p58, %p59
      %p62 = scmp.ne.s32.totalorder %s47, %s61
      %p63 = scmp.eq.s32.totalorder %s16, 0
      %p64 = por %p62, %p63
      %s66 = sadd.s32 %s65, 1
      %p69 = scmp.eq.s32.totalorder %s10, 1
      %p70 = scmp.ne.s32.totalorder %s65, %s67
      %p71 = scmp.eq.s32.totalorder %s10, 0
      %p72 = por %p70, %p71
      %p73 = scmp.ne.s32.totalorder %s65, %s67
      %p74 = scmp.eq.s32.totalorder %s15, 1
      %p75 = por %p73, %p74
      %p76 = scmp.ne.s32.totalorder %s67, %s68
      %p77 = scmp.eq.s32.totalorder %s15, 0
      %p78 = por %p76, %p77
      %p79 = scmp.ne.s32.totalorder %s67, %s68
      %p80 = scmp.eq.s32.totalorder %s16, 1
      %p81 = por %p79, %p80
      %p83 = scmp.ne.s32.totalorder %s68, %s82
      %p84 = scmp.eq.s32.totalorder %s16, 0
      %p85 = por %p83, %p84
      %s86 = ssub.s32 %s10, %s17
      %p87 = scmp.eq.s32.totalorder %s86, 0
      %s89 = sadd.s32 %s88, 1
      %s90 = scalar_select %p87, %s88, %s89
      %p93 = pneg %p87
      %p94 = scmp.eq.s32.totalorder %s10, 1
      %p95 = por %p93, %p94
      %p96 = scmp.ne.s32.totalorder %s88, %s91
      %p97 = scmp.eq.s32.totalorder %s10, 0
      %p98 = por %p96, %p97
      %p99 = scmp.ne.s32.totalorder %s88, %s91
      %p100 = scmp.eq.s32.totalorder %s15, 1
      %p101 = por %p99, %p100
      %p102 = scmp.ne.s32.totalorder %s91, %s92
      %p103 = scmp.eq.s32.totalorder %s15, 0
      %p104 = por %p102, %p103
      %p105 = scmp.ne.s32.totalorder %s91, %s92
      %p106 = scmp.eq.s32.totalorder %s16, 1
      %p107 = por %p105, %p106
      %p109 = scmp.ne.s32.totalorder %s92, %s108
      %p110 = scmp.eq.s32.totalorder %s16, 0
      %p111 = por %p109, %p110
      %p112 = scmp.le.s32.totalorder 1, %s10
      %p113 = scmp.lt.s32.totalorder %s10, 3
      %p114 = pnand %p112, %p113
      %p115 = pneg %p114
      // Predicated region
      $region9: #{tpu_custom_call.1} parent=5 // pred_check
        _
      $region10: #{tpu_custom_call.1} parent=5 // pred_check_branch
        %117 = sbr.rel (%p114) target = $region12
      $region11: #{tpu_custom_call.1} parent=5 // pred_region
        %s118 = ssub.s32 %s10, 1
        // Predicated region
        $region13: #{tpu_custom_call.1} parent=11 // pred_check
          %p119 = pneg %p57
        $region14: #{tpu_custom_call.1} parent=11 // pred_check_branch
          %121 = sbr.rel (%p119) target = $region16
        $region15: #{tpu_custom_call.1} parent=11 // pred_region
          %s123 = ssub.s32 6144, 6144
          %124 = vsyncadd [#allocation3], %s123
          %s125 = sshll.u32 [#allocation2], 4
          %s126 = int_to_ptr.vmem [resolvable:$true] %s125
          %131 = dma.hbm_to_vmem [thread:$0]  %s1, 6144, %s126, [#allocation3], 128, 128, 8
        $region16: #{tpu_custom_call.1} parent=11 // pred_fallthru
          _
        // Predicated region
        $region17: #{tpu_custom_call.1} parent=11 // pred_check
          %p132 = pneg %p78
        $region18: #{tpu_custom_call.1} parent=11 // pred_check_branch
          %134 = sbr.rel (%p132) target = $region20
        $region19: #{tpu_custom_call.1} parent=11 // pred_region
          _
        $region20: #{tpu_custom_call.1} parent=11 // pred_fallthru
          _
      $region12: #{tpu_custom_call.1} parent=5 // pred_fallthru
        _
      %p135 = scmp.lt.s32.totalorder %s10, 2
      // Predicated region
      $region21: #{tpu_custom_call.1} parent=5 // pred_check
        %p136 = pneg %p135
      $region22: #{tpu_custom_call.1} parent=5 // pred_check_branch
        %138 = sbr.rel (%p136) target = $region24
      $region23: #{tpu_custom_call.1} parent=5 // pred_region
        // Predicated region
        $region25: #{tpu_custom_call.1} parent=23 // pred_check
          %p139 = pneg %p30
        $region26: #{tpu_custom_call.1} parent=23 // pred_check_branch
          %141 = sbr.rel (%p139) target = $region28
        $region27: #{tpu_custom_call.1} parent=23 // pred_region
          %s142 = smul.u32 7, %s10
          %s143 = ssub.s32 13, %s142
          %p144 = scmp.lt.s32.totalorder %s143, 7
          %s145 = scalar_select %p144, %s143, 7
          %s146 = smul.u32 128, %s145
          %p147 = scmp.lt.s32.totalorder %s142, 12
          %s148 = scalar_select %p147, %s142, 12
          %s149 = smul.addr %s148, 8
          %s150 = scalar_lea.vmem %s0, %s149
          %s151 = smul.u32 7, %s10
          %s152 = ssub.s32 13, %s151
          %p153 = scmp.lt.s32.totalorder %s152, 7
          %s154 = scalar_select %p153, %s152, 7
          %s155 = smul.u32 128, %s154
        $region28: #{tpu_custom_call.1} parent=23 // pred_fallthru
          _
      $region24: #{tpu_custom_call.1} parent=5 // pred_fallthru
        _
      %p156 = scmp.le.s32.totalorder 1, %s10
      %p157 = scmp.lt.s32.totalorder %s10, 3
      %p158 = pnand %p156, %p157
      %p159 = pneg %p158
      // Predicated region
      $region29: #{tpu_custom_call.1} parent=5 // pred_check
        _
      $region30: #{tpu_custom_call.1} parent=5 // pred_check_branch
        %161 = sbr.rel (%p158) target = $region32
      $region31: #{tpu_custom_call.1} parent=5 // pred_region
        %s162 = ssub.s32 %s10, 1
        // Predicated region
        $region33: #{tpu_custom_call.1} parent=31 // pred_check
          %p163 = pneg %p57
        $region34: #{tpu_custom_call.1} parent=31 // pred_check_branch
          %165 = sbr.rel (%p163) target = $region36
        $region35: #{tpu_custom_call.1} parent=31 // pred_region
          %166 = dma.done [#allocation3], 6144
        $region36: #{tpu_custom_call.1} parent=31 // pred_fallthru
          _
        %s167 = smul.u32 7, %s15
        %s168 = ssub.s32 13, %s167
        %p169 = scmp.lt.s32.totalorder %s168, 7
        %s170 = scalar_select %p169, %s168, 7
        %s171 = smul.u32 128, %s170
        %p172 = scmp.lt.s32.totalorder %s167, 12
        %s173 = scalar_select %p172, %s167, 12
        %s174 = smul.addr %s173, 8
        %s175 = scalar_lea.vmem %s0, %s174
        %p176 = pneg %p36
        %p177 = pneg %p33
        %p178 = pneg %p57
        %p179 = pneg %p54
        %p180 = pneg %p78
        %p181 = pneg %p75
        %p182 = pneg %p104
        %p183 = pneg %p101
        %s184 = sand.u32 %s91, 1
        %s185 = sand.u32 %s91, 1
        %s186 = smul.addr %s185, 56
        %s187 = scalar_lea.vmem [#allocation4], %s186
        %s188 = smul.u32 7, %s15
        %s189 = ssub.s32 13, %s188
        %p190 = scmp.lt.s32.totalorder %s189, 7
        %s191 = scalar_select %p190, %s189, 7
        %s192 = smul.u32 128, %s191
        %p193 = scmp.lt.s32.totalorder %s188, 12
        %s194 = scalar_select %p193, %s188, 12
        %s195 = smul.addr %s194, 8
        %s196 = scalar_lea.vmem %s0, %s195
        %s197 = smul.u32 7, %s15
        %s198 = ssub.s32 13, %s197
        %p199 = scmp.lt.s32.totalorder %s198, 7
        %s200 = scalar_select %p199, %s198, 7
        %s201 = smul.u32 128, %s200
        %s202 = smul.u32 7, %s15
        %s203 = ssub.s32 13, %s202
        %p204 = scmp.lt.s32.totalorder %s203, 7
        %s205 = scalar_select %p204, %s203, 7
        %s206 = smul.u32 128, %s205
        %v207 = vld [vmem:[%s196] sm:$0xff]
        %v208 = vld [vmem:[%s196 + $0x8] sm:$0xff]
        %v209 = vld [vmem:[%s196 + $0x10] sm:$0xff]
        %v210 = vld [vmem:[%s196 + $0x18] sm:$0xff]
        %v211 = vld [vmem:[%s196 + $0x20] sm:$0xff]
        %v212 = vld [vmem:[%s196 + $0x28] sm:$0xff]
        %v213 = vld [vmem:[%s196 + $0x30] sm:$0xff]
        %v214 = vld [vmem:[%s2] sm:$0x7]
        %v215 = vld [vmem:[#allocation2] sm:$0xf]
        %v216 = vlaneseq
        %v217 = vshrl.u32 %v216, 7
        %v218 = vsub.s32 0, %v217
        %v219 = vrot.slane %v214, %v218
        %vm220 = vcmask 31744
        %v222 = vsel %vm220, %v207, 0
        %v225 = vsel %vm220, %v208, 0
        %v228 = vsel %vm220, %v209, 0
        %v231 = vsel %vm220, %v210, 0
        %v234 = vsel %vm220, %v211, 0
        %v237 = vsel %vm220, %v212, 0
        %v240 = vsel %vm220, %v213, 0
        %vm242 = vcmask 1043456
        %v244 = vsel %vm242, %v215, 0
        %246 = vmatprep.subr.mxu0 0.0
        %247 = vmatpush1.msra.mxu0 0.0
        %248 = vmatprep.subr.mxu0 0.0
        %249 = vmatpush1.msra.mxu0 0.0
        %250 = vmatprep.subr.mxu0 0.0
        %251 = vmatpush1.msra.mxu0 0.0
        %252 = vmatprep.subr.mxu0 0.0
        %253 = vmatpush1.msra.mxu0 0.0
        %254 = vmatprep.subr.mxu0 0.0
        %255 = vmatpush1.msra.mxu0 0.0
        %256 = vmatprep.subr.mxu0 0.0
        %257 = vmatpush1.msra.mxu0 0.0
        %258 = vmatprep.subr.mxu0 0.0
        %259 = vmatpush1.msra.mxu0 0.0
        %260 = vmatprep.subr.mxu0 0.0
        %261 = vmatpush1.msra.mxu0 0.0
        %262 = vmatprep.subr.mxu0 0.0
        %263 = vmatpush1.msra.mxu0 0.0
        %264 = vmatprep.subr.mxu0 0.0
        %265 = vmatpush1.msra.mxu0 0.0
        %266 = vmatprep.subr.mxu0 0.0
        %267 = vmatpush1.msra.mxu0 0.0
        %268 = vmatprep.subr.mxu0 0.0
        %269 = vmatpush1.msra.mxu0 0.0
        %270 = vmatprep.subr.mxu0 0.0
        %271 = vmatpush1.msra.mxu0 0.0
        %272 = vmatprep.subr.mxu0 0.0
        %273 = vmatpush1.msra.mxu0 0.0
        %274 = vmatprep.subr.mxu0 0.0
        %275 = vmatpush1.msra.mxu0 0.0
        %276 = vmatprep.subr.mxu0 0.0
        %277 = vmatpush1.msra.mxu0 %v244
        %278 = vmatprep.subr.mxu0 0.0
        %279 = vmatpush2.msra.mxu0 0.0
        %280 = vmatprep.subr.mxu0 0.0
        %281 = vmatpush2.msra.mxu0 0.0
        %282 = vmatprep.subr.mxu0 0.0
        %283 = vmatpush2.msra.mxu0 0.0
        %284 = vmatprep.subr.mxu0 0.0
        %285 = vmatpush2.msra.mxu0 0.0
        %286 = vmatprep.subr.mxu0 0.0
        %287 = vmatpush2.msra.mxu0 0.0
        %288 = vmatprep.subr.mxu0 0.0
        %289 = vmatpush2.msra.mxu0 0.0
        %290 = vmatprep.subr.mxu0 0.0
        %291 = vmatpush2.msra.mxu0 0.0
        %292 = vmatprep.subr.mxu0 0.0
        %293 = vmatpush2.msra.mxu0 0.0
        %294 = vmatprep.subr.mxu0 0.0
        %295 = vmatpush2.msra.mxu0 0.0
        %296 = vmatprep.subr.mxu0 0.0
        %297 = vmatpush2.msra.mxu0 0.0
        %298 = vmatprep.subr.mxu0 0.0
        %299 = vmatpush2.msra.mxu0 0.0
        %300 = vmatprep.subr.mxu0 0.0
        %301 = vmatpush2.msra.mxu0 0.0
        %302 = vmatprep.subr.mxu0 0.0
        %303 = vmatpush2.msra.mxu0 0.0
        %304 = vmatprep.subr.mxu0 0.0
        %305 = vmatpush2.msra.mxu0 0.0
        %306 = vmatprep.subr.mxu0 0.0
        %307 = vmatpush2.msra.mxu0 0.0
        %308 = vmatprep.subr.mxu0 0.0
        %309 = vmatpush2.msra.mxu0 0.0
        %310 = vmatprep.mubr.f32.mxu0 0.0
        %311 = vmatmul.mubr.f32.gmra.mxu0 %v222
        %v312 = vpop.f32.mrf.mxu0
        %v313 = vadd.f32 %v219, %v312
        %v314 = vpop.f32.mrf.mxu0
        %315 = vmatprep.mubr.f32.mxu0 0.0
        %316 = vmatmul.mubr.f32.gmra.mxu0 %v225
        %v317 = vpop.f32.mrf.mxu0
        %v318 = vadd.f32 %v219, %v317
        %v319 = vpop.f32.mrf.mxu0
        %320 = vmatprep.mubr.f32.mxu0 0.0
        %321 = vmatmul.mubr.f32.gmra.mxu0 %v228
        %v322 = vpop.f32.mrf.mxu0
        %v323 = vadd.f32 %v219, %v322
        %v324 = vpop.f32.mrf.mxu0
        %325 = vmatprep.mubr.f32.mxu0 0.0
        %326 = vmatmul.mubr.f32.gmra.mxu0 %v231
        %v327 = vpop.f32.mrf.mxu0
        %v328 = vadd.f32 %v219, %v327
        %v329 = vpop.f32.mrf.mxu0
        %330 = vmatprep.mubr.f32.mxu0 0.0
        %331 = vmatmul.mubr.f32.gmra.mxu0 %v234
        %v332 = vpop.f32.mrf.mxu0
        %v333 = vadd.f32 %v219, %v332
        %v334 = vpop.f32.mrf.mxu0
        %335 = vmatprep.mubr.f32.mxu0 0.0
        %336 = vmatmul.mubr.f32.gmra.mxu0 %v237
        %v337 = vpop.f32.mrf.mxu0
        %v338 = vadd.f32 %v219, %v337
        %v339 = vpop.f32.mrf.mxu0
        %340 = vmatprep.mubr.f32.mxu0 0.0
        %341 = vmatmul.mubr.f32.gmra.mxu0 %v240
        %v342 = vpop.f32.mrf.mxu0
        %v343 = vadd.f32 %v219, %v342
        %v344 = vpop.f32.mrf.mxu0
        %345 = vdwg.mxu0
        %v346 = vmax.f32 %v313, 0.0
        %v347 = vmax.f32 %v318, 0.0
        %v348 = vmax.f32 %v323, 0.0
        %v349 = vmax.f32 %v328, 0.0
        %v350 = vmax.f32 %v333, 0.0
        %v351 = vmax.f32 %v338, 0.0
        %v352 = vmax.f32 %v343, 0.0
        %s353 = scalar_lea.vmem [#allocation2], 128
        %v354 = vld [vmem:[%s353] sm:$0xff]
        %v355 = vld [vmem:[%s353 + $0x8] sm:$0xff]
        %v356 = vld [vmem:[%s353 + $0x10] sm:$0xff]
        %v357 = vld [vmem:[%s353 + $0x18] sm:$0xff]
        %v358 = vld [vmem:[%s353 + $0x20] sm:$0xff]
        %v359 = vld [vmem:[%s353 + $0x28] sm:$0xff]
        %v360 = vld [vmem:[%s353 + $0x30] sm:$0xff]
        %v361 = vld [vmem:[%s353 + $0x38] sm:$0xff]
        %v362 = vld [vmem:[%s353 + $0x40] sm:$0xff]
        %v363 = vld [vmem:[%s353 + $0x48] sm:$0xff]
        %v364 = vld [vmem:[%s353 + $0x50] sm:$0xff]
        %v365 = vld [vmem:[%s353 + $0x58] sm:$0xff]
        %v366 = vld [vmem:[%s353 + $0x60] sm:$0xff]
        %v367 = vld [vmem:[%s353 + $0x68] sm:$0xff]
        %v368 = vld [vmem:[%s353 + $0x70] sm:$0xff]
        %v369 = vld [vmem:[%s353 + $0x78] sm:$0xff]
        %v370 = vlaneseq
        %v371 = vshrl.u32 %v370, 7
        %v372 = vsub.s32 1, %v371
        %v373 = vrot.slane %v214, %v372
        %374 = vmatprep.subr.mxu0 0.0
        %375 = vmatpush1.msra.mxu0 %v369
        %376 = vmatprep.subr.mxu0 0.0
        %377 = vmatpush1.msra.mxu0 %v368
        %378 = vmatprep.subr.mxu0 0.0
        %379 = vmatpush1.msra.mxu0 %v367
        %380 = vmatprep.subr.mxu0 0.0
        %381 = vmatpush1.msra.mxu0 %v366
        %382 = vmatprep.subr.mxu0 0.0
        %383 = vmatpush1.msra.mxu0 %v365
        %384 = vmatprep.subr.mxu0 0.0
        %385 = vmatpush1.msra.mxu0 %v364
        %386 = vmatprep.subr.mxu0 0.0
        %387 = vmatpush1.msra.mxu0 %v363
        %388 = vmatprep.subr.mxu0 0.0
        %389 = vmatpush1.msra.mxu0 %v362
        %390 = vmatprep.subr.mxu0 0.0
        %391 = vmatpush1.msra.mxu0 %v361
        %392 = vmatprep.subr.mxu0 0.0
        %393 = vmatpush1.msra.mxu0 %v360
        %394 = vmatprep.subr.mxu0 0.0
        %395 = vmatpush1.msra.mxu0 %v359
        %396 = vmatprep.subr.mxu0 0.0
        %397 = vmatpush1.msra.mxu0 %v358
        %398 = vmatprep.subr.mxu0 0.0
        %399 = vmatpush1.msra.mxu0 %v357
        %400 = vmatprep.subr.mxu0 0.0
        %401 = vmatpush1.msra.mxu0 %v356
        %402 = vmatprep.subr.mxu0 0.0
        %403 = vmatpush1.msra.mxu0 %v355
        %404 = vmatprep.subr.mxu0 0.0
        %405 = vmatpush1.msra.mxu0 %v354
        %406 = vmatprep.subr.mxu0 0.0
        %407 = vmatpush2.msra.mxu0 0.0
        %408 = vmatprep.subr.mxu0 0.0
        %409 = vmatpush2.msra.mxu0 0.0
        %410 = vmatprep.subr.mxu0 0.0
        %411 = vmatpush2.msra.mxu0 0.0
        %412 = vmatprep.subr.mxu0 0.0
        %413 = vmatpush2.msra.mxu0 0.0
        %414 = vmatprep.subr.mxu0 0.0
        %415 = vmatpush2.msra.mxu0 0.0
        %416 = vmatprep.subr.mxu0 0.0
        %417 = vmatpush2.msra.mxu0 0.0
        %418 = vmatprep.subr.mxu0 0.0
        %419 = vmatpush2.msra.mxu0 0.0
        %420 = vmatprep.subr.mxu0 0.0
        %421 = vmatpush2.msra.mxu0 0.0
        %422 = vmatprep.subr.mxu0 0.0
        %423 = vmatpush2.msra.mxu0 0.0
        %424 = vmatprep.subr.mxu0 0.0
        %425 = vmatpush2.msra.mxu0 0.0
        %426 = vmatprep.subr.mxu0 0.0
        %427 = vmatpush2.msra.mxu0 0.0
        %428 = vmatprep.subr.mxu0 0.0
        %429 = vmatpush2.msra.mxu0 0.0
        %430 = vmatprep.subr.mxu0 0.0
        %431 = vmatpush2.msra.mxu0 0.0
        %432 = vmatprep.subr.mxu0 0.0
        %433 = vmatpush2.msra.mxu0 0.0
        %434 = vmatprep.subr.mxu0 0.0
        %435 = vmatpush2.msra.mxu0 0.0
        %436 = vmatprep.subr.mxu0 0.0
        %437 = vmatpush2.msra.mxu0 0.0
        %438 = vmatprep.mubr.f32.mxu0 0.0
        %439 = vmatmul.mubr.f32.gmra.mxu0 %v346
        %v440 = vpop.f32.mrf.mxu0
        %v441 = vadd.f32 %v373, %v440
        %v442 = vpop.f32.mrf.mxu0
        %443 = vmatprep.mubr.f32.mxu0 0.0
        %444 = vmatmul.mubr.f32.gmra.mxu0 %v347
        %v445 = vpop.f32.mrf.mxu0
        %v446 = vadd.f32 %v373, %v445
        %v447 = vpop.f32.mrf.mxu0
        %448 = vmatprep.mubr.f32.mxu0 0.0
        %449 = vmatmul.mubr.f32.gmra.mxu0 %v348
        %v450 = vpop.f32.mrf.mxu0
        %v451 = vadd.f32 %v373, %v450
        %v452 = vpop.f32.mrf.mxu0
        %453 = vmatprep.mubr.f32.mxu0 0.0
        %454 = vmatmul.mubr.f32.gmra.mxu0 %v349
        %v455 = vpop.f32.mrf.mxu0
        %v456 = vadd.f32 %v373, %v455
        %v457 = vpop.f32.mrf.mxu0
        %458 = vmatprep.mubr.f32.mxu0 0.0
        %459 = vmatmul.mubr.f32.gmra.mxu0 %v350
        %v460 = vpop.f32.mrf.mxu0
        %v461 = vadd.f32 %v373, %v460
        %v462 = vpop.f32.mrf.mxu0
        %463 = vmatprep.mubr.f32.mxu0 0.0
        %464 = vmatmul.mubr.f32.gmra.mxu0 %v351
        %v465 = vpop.f32.mrf.mxu0
        %v466 = vadd.f32 %v373, %v465
        %v467 = vpop.f32.mrf.mxu0
        %468 = vmatprep.mubr.f32.mxu0 0.0
        %469 = vmatmul.mubr.f32.gmra.mxu0 %v352
        %v470 = vpop.f32.mrf.mxu0
        %v471 = vadd.f32 %v373, %v470
        %v472 = vpop.f32.mrf.mxu0
        %473 = vdwg.mxu0
        %v474 = vmax.f32 %v441, 0.0
        %v475 = vmax.f32 %v446, 0.0
        %v476 = vmax.f32 %v451, 0.0
        %v477 = vmax.f32 %v456, 0.0
        %v478 = vmax.f32 %v461, 0.0
        %v479 = vmax.f32 %v466, 0.0
        %v480 = vmax.f32 %v471, 0.0
        %s481 = scalar_lea.vmem [#allocation2], 256
        %v482 = vld [vmem:[%s481] sm:$0xff]
        %v483 = vld [vmem:[%s481 + $0x8] sm:$0xff]
        %v484 = vld [vmem:[%s481 + $0x10] sm:$0xff]
        %v485 = vld [vmem:[%s481 + $0x18] sm:$0xff]
        %v486 = vld [vmem:[%s481 + $0x20] sm:$0xff]
        %v487 = vld [vmem:[%s481 + $0x28] sm:$0xff]
        %v488 = vld [vmem:[%s481 + $0x30] sm:$0xff]
        %v489 = vld [vmem:[%s481 + $0x38] sm:$0xff]
        %v490 = vld [vmem:[%s481 + $0x40] sm:$0xff]
        %v491 = vld [vmem:[%s481 + $0x48] sm:$0xff]
        %v492 = vld [vmem:[%s481 + $0x50] sm:$0xff]
        %v493 = vld [vmem:[%s481 + $0x58] sm:$0xff]
        %v494 = vld [vmem:[%s481 + $0x60] sm:$0xff]
        %v495 = vld [vmem:[%s481 + $0x68] sm:$0xff]
        %v496 = vld [vmem:[%s481 + $0x70] sm:$0xff]
        %v497 = vld [vmem:[%s481 + $0x78] sm:$0xff]
        %v498 = vlaneseq
        %v499 = vshrl.u32 %v498, 7
        %v500 = vsub.s32 2, %v499
        %v501 = vrot.slane %v214, %v500
        %502 = vmatprep.subr.mxu0 0.0
        %503 = vmatpush1.msra.mxu0 %v497
        %504 = vmatprep.subr.mxu0 0.0
        %505 = vmatpush1.msra.mxu0 %v496
        %506 = vmatprep.subr.mxu0 0.0
        %507 = vmatpush1.msra.mxu0 %v495
        %508 = vmatprep.subr.mxu0 0.0
        %509 = vmatpush1.msra.mxu0 %v494
        %510 = vmatprep.subr.mxu0 0.0
        %511 = vmatpush1.msra.mxu0 %v493
        %512 = vmatprep.subr.mxu0 0.0
        %513 = vmatpush1.msra.mxu0 %v492
        %514 = vmatprep.subr.mxu0 0.0
        %515 = vmatpush1.msra.mxu0 %v491
        %516 = vmatprep.subr.mxu0 0.0
        %517 = vmatpush1.msra.mxu0 %v490
        %518 = vmatprep.subr.mxu0 0.0
        %519 = vmatpush1.msra.mxu0 %v489
        %520 = vmatprep.subr.mxu0 0.0
        %521 = vmatpush1.msra.mxu0 %v488
        %522 = vmatprep.subr.mxu0 0.0
        %523 = vmatpush1.msra.mxu0 %v487
        %524 = vmatprep.subr.mxu0 0.0
        %525 = vmatpush1.msra.mxu0 %v486
        %526 = vmatprep.subr.mxu0 0.0
        %527 = vmatpush1.msra.mxu0 %v485
        %528 = vmatprep.subr.mxu0 0.0
        %529 = vmatpush1.msra.mxu0 %v484
        %530 = vmatprep.subr.mxu0 0.0
        %531 = vmatpush1.msra.mxu0 %v483
        %532 = vmatprep.subr.mxu0 0.0
        %533 = vmatpush1.msra.mxu0 %v482
        %534 = vmatprep.subr.mxu0 0.0
        %535 = vmatpush2.msra.mxu0 0.0
        %536 = vmatprep.subr.mxu0 0.0
        %537 = vmatpush2.msra.mxu0 0.0
        %538 = vmatprep.subr.mxu0 0.0
        %539 = vmatpush2.msra.mxu0 0.0
        %540 = vmatprep.subr.mxu0 0.0
        %541 = vmatpush2.msra.mxu0 0.0
        %542 = vmatprep.subr.mxu0 0.0
        %543 = vmatpush2.msra.mxu0 0.0
        %544 = vmatprep.subr.mxu0 0.0
        %545 = vmatpush2.msra.mxu0 0.0
        %546 = vmatprep.subr.mxu0 0.0
        %547 = vmatpush2.msra.mxu0 0.0
        %548 = vmatprep.subr.mxu0 0.0
        %549 = vmatpush2.msra.mxu0 0.0
        %550 = vmatprep.subr.mxu0 0.0
        %551 = vmatpush2.msra.mxu0 0.0
        %552 = vmatprep.subr.mxu0 0.0
        %553 = vmatpush2.msra.mxu0 0.0
        %554 = vmatprep.subr.mxu0 0.0
        %555 = vmatpush2.msra.mxu0 0.0
        %556 = vmatprep.subr.mxu0 0.0
        %557 = vmatpush2.msra.mxu0 0.0
        %558 = vmatprep.subr.mxu0 0.0
        %559 = vmatpush2.msra.mxu0 0.0
        %560 = vmatprep.subr.mxu0 0.0
        %561 = vmatpush2.msra.mxu0 0.0
        %562 = vmatprep.subr.mxu0 0.0
        %563 = vmatpush2.msra.mxu0 0.0
        %564 = vmatprep.subr.mxu0 0.0
        %565 = vmatpush2.msra.mxu0 0.0
        %566 = vmatprep.mubr.f32.mxu0 0.0
        %567 = vmatmul.mubr.f32.gmra.mxu0 %v474
        %v568 = vpop.f32.mrf.mxu0
        %v569 = vadd.f32 %v501, %v568
        %v570 = vpop.f32.mrf.mxu0
        %571 = vmatprep.mubr.f32.mxu0 0.0
        %572 = vmatmul.mubr.f32.gmra.mxu0 %v475
        %v573 = vpop.f32.mrf.mxu0
        %v574 = vadd.f32 %v501, %v573
        %v575 = vpop.f32.mrf.mxu0
        %576 = vmatprep.mubr.f32.mxu0 0.0
        %577 = vmatmul.mubr.f32.gmra.mxu0 %v476
        %v578 = vpop.f32.mrf.mxu0
        %v579 = vadd.f32 %v501, %v578
        %v580 = vpop.f32.mrf.mxu0
        %581 = vmatprep.mubr.f32.mxu0 0.0
        %582 = vmatmul.mubr.f32.gmra.mxu0 %v477
        %v583 = vpop.f32.mrf.mxu0
        %v584 = vadd.f32 %v501, %v583
        %v585 = vpop.f32.mrf.mxu0
        %586 = vmatprep.mubr.f32.mxu0 0.0
        %587 = vmatmul.mubr.f32.gmra.mxu0 %v478
        %v588 = vpop.f32.mrf.mxu0
        %v589 = vadd.f32 %v501, %v588
        %v590 = vpop.f32.mrf.mxu0
        %591 = vmatprep.mubr.f32.mxu0 0.0
        %592 = vmatmul.mubr.f32.gmra.mxu0 %v479
        %v593 = vpop.f32.mrf.mxu0
        %v594 = vadd.f32 %v501, %v593
        %v595 = vpop.f32.mrf.mxu0
        %596 = vmatprep.mubr.f32.mxu0 0.0
        %597 = vmatmul.mubr.f32.gmra.mxu0 %v480
        %v598 = vpop.f32.mrf.mxu0
        %v599 = vadd.f32 %v501, %v598
        %v600 = vpop.f32.mrf.mxu0
        %601 = vdwg.mxu0
        %602 = vmax.xlane.f32.xlu0 %v569
        %v603 = vpop.xlane.xlu0 %602
        %604 = vmax.xlane.f32.xlu0 %v574
        %v605 = vpop.xlane.xlu0 %604
        %606 = vmax.xlane.f32.xlu0 %v579
        %v607 = vpop.xlane.xlu0 %606
        %608 = vmax.xlane.f32.xlu0 %v584
        %v609 = vpop.xlane.xlu0 %608
        %610 = vmax.xlane.f32.xlu0 %v589
        %v611 = vpop.xlane.xlu0 %610
        %612 = vmax.xlane.f32.xlu0 %v594
        %v613 = vpop.xlane.xlu0 %612
        %614 = vmax.xlane.f32.xlu0 %v599
        %v615 = vpop.xlane.xlu0 %614
        %v616 = vsub.f32 %v569, %v603
        %v617 = vsub.f32 %v574, %v605
        %v618 = vsub.f32 %v579, %v607
        %v619 = vsub.f32 %v584, %v609
        %v620 = vsub.f32 %v589, %v611
        %v621 = vsub.f32 %v594, %v613
        %v622 = vsub.f32 %v599, %v615
        %v623 = vmul.f32 %v616, 1.442695
        %v624 = vpow.pop %v623
        %v625 = vmul.f32 %v617, 1.442695
        %v626 = vpow.pop %v625
        %v627 = vmul.f32 %v618, 1.442695
        %v628 = vpow.pop %v627
        %v629 = vmul.f32 %v619, 1.442695
        %v630 = vpow.pop %v629
        %v631 = vmul.f32 %v620, 1.442695
        %v632 = vpow.pop %v631
        %v633 = vmul.f32 %v621, 1.442695
        %v634 = vpow.pop %v633
        %v635 = vmul.f32 %v622, 1.442695
        %v636 = vpow.pop %v635
        %637 = vadd.xlane.f32.xlu0 %v624
        %v638 = vpop.xlane.xlu0 %637
        %639 = vadd.xlane.f32.xlu0 %v626
        %v640 = vpop.xlane.xlu0 %639
        %641 = vadd.xlane.f32.xlu0 %v628
        %v642 = vpop.xlane.xlu0 %641
        %643 = vadd.xlane.f32.xlu0 %v630
        %v644 = vpop.xlane.xlu0 %643
        %645 = vadd.xlane.f32.xlu0 %v632
        %v646 = vpop.xlane.xlu0 %645
        %647 = vadd.xlane.f32.xlu0 %v634
        %v648 = vpop.xlane.xlu0 %647
        %649 = vadd.xlane.f32.xlu0 %v636
        %v650 = vpop.xlane.xlu0 %649
        %v651 = vrcp.pop %v638
        %v652 = vrcp.pop %v640
        %v653 = vrcp.pop %v642
        %v654 = vrcp.pop %v644
        %v655 = vrcp.pop %v646
        %v656 = vrcp.pop %v648
        %v657 = vrcp.pop %v650
        %v658 = vmul.f32 %v624, %v651
        %v659 = vmul.f32 %v626, %v652
        %v660 = vmul.f32 %v628, %v653
        %v661 = vmul.f32 %v630, %v654
        %v662 = vmul.f32 %v632, %v655
        %v663 = vmul.f32 %v634, %v656
        %v664 = vmul.f32 %v636, %v657
        %vm665 = vcmask 15360
        %666 = vst.msk [vmem:[%s187] sm:$0xff] %vm665, %v658
        %667 = vst.msk [vmem:[%s187 + $0x8] sm:$0xff] %vm665, %v659
        %668 = vst.msk [vmem:[%s187 + $0x10] sm:$0xff] %vm665, %v660
        %669 = vst.msk [vmem:[%s187 + $0x18] sm:$0xff] %vm665, %v661
        %670 = vst.msk [vmem:[%s187 + $0x20] sm:$0xff] %vm665, %v662
        %671 = vst.msk [vmem:[%s187 + $0x28] sm:$0xff] %vm665, %v663
        %672 = vst.msk [vmem:[%s187 + $0x30] sm:$0xff] %vm665, %v664
        %s673 = sand.u32 %s91, 1
        %s674 = sand.u32 %s91, 1
        %s675 = smul.addr %s674, 56
        %s676 = scalar_lea.vmem [#allocation4], %s675
        // Predicated region
        $region37: #{tpu_custom_call.1} parent=31 // pred_check
          %p677 = pneg %p101
        $region38: #{tpu_custom_call.1} parent=31 // pred_check_branch
          %679 = sbr.rel (%p677) target = $region40
        $region39: #{tpu_custom_call.1} parent=31 // pred_region
          %s680 = smul.u32 7, %s15
          %s681 = ssub.s32 13, %s680
          %p682 = scmp.lt.s32.totalorder %s681, 7
          %s683 = scalar_select %p682, %s681, 7
          %s684 = smul.u32 128, %s683
          %p685 = scmp.ne.s32.totalorder 0, %s684
          %s686 = smul.addr %s680, 8
          %s687 = scalar_lea.vmem %s3, %s686
          // Predicated region
          $region41: #{tpu_custom_call.1} parent=39 // pred_check
            %p688 = pneg %p685
          $region42: #{tpu_custom_call.1} parent=39 // pred_check_branch
            %690 = sbr.rel (%p688) target = $region44
          $region43: #{tpu_custom_call.1} parent=39 // pred_region
            // Predicated region
            $region45: #{tpu_custom_call.1} parent=43 // pred_check
              _
            $region46: #{tpu_custom_call.1} parent=43 // pred_check_branch
              %692 = sbr.rel (0) target = $region48
            $region47: #{tpu_custom_call.1} parent=43 // pred_region
              // Predicated region
              $region67: #{tpu_custom_call.1} parent=47 // pred_check
                _
              $region68: #{tpu_custom_call.1} parent=47 // pred_check_branch
                %755 = sbr.rel (0) target = $region70
              $region69: #{tpu_custom_call.1} parent=47 // pred_region
                %s756 = sdiv.u32.pop %s683, 7
                %s757 = srem.u32.pop %s683, 7
                // While loop
                $region71: #{tpu_custom_call.1} parent=69 // loop_pre_header
                  _
                $region72: #{tpu_custom_call.1} parent=69 // loop_header
                  %s759 = sphi 0, %s761
                  %p760 = scmp.ge.s32.totalorder %s759, %s756
                  %s764 = sphi 0, %s783
                  %s765 = sphi %s676, %s786
                  %s766 = sphi %s687, %s787
                $region73: #{tpu_custom_call.1} parent=69 // loop_header_branch
                  %763 = sbr.rel (%p760) target = $region77
                $region74: #{tpu_custom_call.1} parent=69 // loop_body
                  %v767 = vld [vmem:[%s765] sm:$0xff]
                  %768 = vst [vmem:[%s766] sm:$0xff] %v767
                  %v769 = vld [vmem:[%s765 + $0x8] sm:$0xff]
                  %770 = vst [vmem:[%s766 + $0x8] sm:$0xff] %v769
                  %v771 = vld [vmem:[%s765 + $0x10] sm:$0xff]
                  %772 = vst [vmem:[%s766 + $0x10] sm:$0xff] %v771
                  %v773 = vld [vmem:[%s765 + $0x18] sm:$0xff]
                  %774 = vst [vmem:[%s766 + $0x18] sm:$0xff] %v773
                  %v775 = vld [vmem:[%s765 + $0x20] sm:$0xff]
                  %776 = vst [vmem:[%s766 + $0x20] sm:$0xff] %v775
                  %v777 = vld [vmem:[%s765 + $0x28] sm:$0xff]
                  %778 = vst [vmem:[%s766 + $0x28] sm:$0xff] %v777
                  %v779 = vld [vmem:[%s765 + $0x30] sm:$0xff]
                  %780 = vst [vmem:[%s766 + $0x30] sm:$0xff] %v779
                  %s781 = sadd.s32 1, %s764
                  %p782 = scmp.ge.s32.totalorder %s781, %s756
                  %s783 = scalar_select %p782, 0, %s781
                  %s784 = smul.u32 %s783, 56
                  %s785 = smul.u32 %s783, 56
                  %s786 = scalar_lea.vmem %s676, %s784 [#allocation4]
                  %s787 = scalar_lea.vmem %s687, %s785
                $region75: #{tpu_custom_call.1} parent=69 // loop_footer
                  %s761 = sadd.s32 %s759, 1
                $region76: #{tpu_custom_call.1} parent=69 // loop_footer_branch
                  %758 = sbr.rel target = $region72
                $region77: #{tpu_custom_call.1} parent=69 // loop_exit
                  _
                %s788 = sdiv.u32.pop %s683, 7
                %s789 = srem.u32.pop %s683, 7
                %s790 = smul.u32 %s788, 7
                %s791 = smul.u32 8, %s790
                %s792 = scalar_lea.vmem %s676, %s791 [#allocation4]
                %s793 = smul.u32 8, %s790
                %s794 = scalar_lea.vmem %s687, %s793
                // While loop
                $region78: #{tpu_custom_call.1} parent=69 // loop_pre_header
                  _
                $region79: #{tpu_custom_call.1} parent=69 // loop_header
                  %s796 = sphi 0, %s798
                  %p797 = scmp.ge.s32.totalorder %s796, %s789
                  %s801 = sphi 0, %s808
                  %s802 = sphi %s792, %s811
                  %s803 = sphi %s794, %s812
                $region80: #{tpu_custom_call.1} parent=69 // loop_header_branch
                  %800 = sbr.rel (%p797) target = $region84
                $region81: #{tpu_custom_call.1} parent=69 // loop_body
                  %v804 = vld [vmem:[%s802] sm:$0xff]
                  %805 = vst [vmem:[%s803] sm:$0xff] %v804
                  %s806 = sadd.s32 1, %s801
                  %p807 = scmp.ge.s32.totalorder %s806, %s789
                  %s808 = scalar_select %p807, 0, %s806
                  %s809 = smul.u32 %s808, 8
                  %s810 = smul.u32 %s808, 8
                  %s811 = scalar_lea.vmem %s792, %s809 [#allocation4]
                  %s812 = scalar_lea.vmem %s794, %s810
                $region82: #{tpu_custom_call.1} parent=69 // loop_footer
                  %s798 = sadd.s32 %s796, 1
                $region83: #{tpu_custom_call.1} parent=69 // loop_footer_branch
                  %795 = sbr.rel target = $region79
                $region84: #{tpu_custom_call.1} parent=69 // loop_exit
                  _
              $region70: #{tpu_custom_call.1} parent=47 // pred_fallthru
                _
              // Predicated region
              $region85: #{tpu_custom_call.1} parent=47 // pred_check
                _
              $region86: #{tpu_custom_call.1} parent=47 // pred_check_branch
                %814 = sbr.rel target = $region88
              $region87: #{tpu_custom_call.1} parent=47 // pred_region
                _
              $region88: #{tpu_custom_call.1} parent=47 // pred_fallthru
                _
            $region48: #{tpu_custom_call.1} parent=43 // pred_fallthru
              _
            // Predicated region
            $region49: #{tpu_custom_call.1} parent=43 // pred_check
              _
            $region50: #{tpu_custom_call.1} parent=43 // pred_check_branch
              %694 = sbr.rel target = $region52
            $region51: #{tpu_custom_call.1} parent=43 // pred_region
              %s696 = ssub.s32 256, 1
              %s697 = sdiv.u32.pop %s683, 7
              %s698 = srem.u32.pop %s683, 7
              // While loop
              $region53: #{tpu_custom_call.1} parent=51 // loop_pre_header
                _
              $region54: #{tpu_custom_call.1} parent=51 // loop_header
                %s700 = sphi 0, %s702
                %p701 = scmp.ge.s32.totalorder %s700, %s697
                %s705 = sphi 0, %s724
                %s706 = sphi %s676, %s727
                %s707 = sphi %s687, %s728
              $region55: #{tpu_custom_call.1} parent=51 // loop_header_branch
                %704 = sbr.rel (%p701) target = $region59
              $region56: #{tpu_custom_call.1} parent=51 // loop_body
                %v708 = vld [vmem:[%s706] sm:%s696]
                %709 = vst [vmem:[%s707] sm:%s696] %v708
                %v710 = vld [vmem:[%s706 + $0x8] sm:%s696]
                %711 = vst [vmem:[%s707 + $0x8] sm:%s696] %v710
                %v712 = vld [vmem:[%s706 + $0x10] sm:%s696]
                %713 = vst [vmem:[%s707 + $0x10] sm:%s696] %v712
                %v714 = vld [vmem:[%s706 + $0x18] sm:%s696]
                %715 = vst [vmem:[%s707 + $0x18] sm:%s696] %v714
                %v716 = vld [vmem:[%s706 + $0x20] sm:%s696]
                %717 = vst [vmem:[%s707 + $0x20] sm:%s696] %v716
                %v718 = vld [vmem:[%s706 + $0x28] sm:%s696]
                %719 = vst [vmem:[%s707 + $0x28] sm:%s696] %v718
                %v720 = vld [vmem:[%s706 + $0x30] sm:%s696]
                %721 = vst [vmem:[%s707 + $0x30] sm:%s696] %v720
                %s722 = sadd.s32 1, %s705
                %p723 = scmp.ge.s32.totalorder %s722, %s697
                %s724 = scalar_select %p723, 0, %s722
                %s725 = smul.u32 %s724, 56
                %s726 = smul.u32 %s724, 56
                %s727 = scalar_lea.vmem %s676, %s725 [#allocation4]
                %s728 = scalar_lea.vmem %s687, %s726
              $region57: #{tpu_custom_call.1} parent=51 // loop_footer
                %s702 = sadd.s32 %s700, 1
              $region58: #{tpu_custom_call.1} parent=51 // loop_footer_branch
                %699 = sbr.rel target = $region54
              $region59: #{tpu_custom_call.1} parent=51 // loop_exit
                _
              %s729 = sdiv.u32.pop %s683, 7
              %s730 = srem.u32.pop %s683, 7
              %s731 = smul.u32 %s729, 7
              %s732 = smul.u32 8, %s731
              %s733 = scalar_lea.vmem %s676, %s732 [#allocation4]
              %s734 = smul.u32 8, %s731
              %s735 = scalar_lea.vmem %s687, %s734
              // While loop
              $region60: #{tpu_custom_call.1} parent=51 // loop_pre_header
                _
              $region61: #{tpu_custom_call.1} parent=51 // loop_header
                %s737 = sphi 0, %s739
                %p738 = scmp.ge.s32.totalorder %s737, %s730
                %s742 = sphi 0, %s749
                %s743 = sphi %s733, %s752
                %s744 = sphi %s735, %s753
              $region62: #{tpu_custom_call.1} parent=51 // loop_header_branch
                %741 = sbr.rel (%p738) target = $region66
              $region63: #{tpu_custom_call.1} parent=51 // loop_body
                %v745 = vld [vmem:[%s743] sm:%s696]
                %746 = vst [vmem:[%s744] sm:%s696] %v745
                %s747 = sadd.s32 1, %s742
                %p748 = scmp.ge.s32.totalorder %s747, %s730
                %s749 = scalar_select %p748, 0, %s747
                %s750 = smul.u32 %s749, 8
                %s751 = smul.u32 %s749, 8
                %s752 = scalar_lea.vmem %s733, %s750 [#allocation4]
                %s753 = scalar_lea.vmem %s735, %s751
              $region64: #{tpu_custom_call.1} parent=51 // loop_footer
                %s739 = sadd.s32 %s737, 1
              $region65: #{tpu_custom_call.1} parent=51 // loop_footer_branch
                %736 = sbr.rel target = $region61
              $region66: #{tpu_custom_call.1} parent=51 // loop_exit
                _
            $region52: #{tpu_custom_call.1} parent=43 // pred_fallthru
              _
          $region44: #{tpu_custom_call.1} parent=39 // pred_fallthru
            _
          %815 = vnop
        $region40: #{tpu_custom_call.1} parent=31 // pred_fallthru
          _
      $region32: #{tpu_custom_call.1} parent=5 // pred_fallthru
        _
      %p816 = scmp.le.s32.totalorder 2, %s10
      // Predicated region
      $region89: #{tpu_custom_call.1} parent=5 // pred_check
        %p817 = pneg %p816
      $region90: #{tpu_custom_call.1} parent=5 // pred_check_branch
        %819 = sbr.rel (%p817) target = $region92
      $region91: #{tpu_custom_call.1} parent=5 // pred_region
        %s820 = ssub.s32 %s10, 2
        // Predicated region
        $region93: #{tpu_custom_call.1} parent=91 // pred_check
          %p821 = pneg %p107
        $region94: #{tpu_custom_call.1} parent=91 // pred_check_branch
          %823 = sbr.rel (%p821) target = $region96
        $region95: #{tpu_custom_call.1} parent=91 // pred_region
          %s824 = sand.u32 %s92, 1
          %s825 = sand.u32 %s92, 1
          %s826 = smul.addr %s825, 56
          %s827 = scalar_lea.vmem [#allocation4], %s826
        $region96: #{tpu_custom_call.1} parent=91 // pred_fallthru
          _
      $region92: #{tpu_custom_call.1} parent=5 // pred_fallthru
        _
    $region6: #{tpu_custom_call.1} parent=1 // loop_footer
      %s14 = sadd.s32 1, %s10
    $region7: #{tpu_custom_call.1} parent=1 // loop_footer_branch
      %9 = sbr.rel target = $region3
    $region8: #{tpu_custom_call.1} parent=1 // loop_exit
      _
    %828 = vsyncpa [#allocation3], 1
    %s829 = scalar_lea.sflag [#allocation3], 1
    %830 = vsyncpa %s829, 1

</llo_original>
